<compile_context>
chip_gen: v7x
topology: tpu7x:2x2x1
jax: 0.10.0
libtpu: 0.0.40
codegen_flags: <defaults>
</compile_context>

<pallas_src>
import functools
import math

import jax
import jax.numpy as jnp
from jax import lax
from jax.experimental import pallas as pl
from jax.experimental.pallas import tpu as pltpu


def _transform_kernel(x_ref, w_ref, b_ref, gamma_ref, beta_ref, o_ref, *, eps):
    # x_ref: (TM, H), w_ref: (H, H), b/gamma/beta: (1, H), o_ref: (TM, H)

    # Dense: operands in native dtype (bf16 stays bf16), f32 accumulate on MXU.
    h = jnp.dot(x_ref[...], w_ref[...], preferred_element_type=jnp.float32)

    # Hoist the small per-feature vectors: cast once, broadcast once.
    b = b_ref[...].astype(jnp.float32)
    gamma = gamma_ref[...].astype(jnp.float32)
    beta = beta_ref[...].astype(jnp.float32)

    h = h + b

    # Exact (erf) GELU, matching HF ACT2FN["gelu"] / torch.nn.functional.gelu.
    # TODO(synk): jax.nn.gelu(approximate=True) would route through the EUP
    # (tanh) and free VALU slots, but changes numerics vs. the PyTorch module.
    h = 0.5 * h * (1.0 + lax.erf(h * (1.0 / math.sqrt(2.0))))

    # LayerNorm over the hidden axis, biased variance like torch.nn.LayerNorm.
    mean = jnp.mean(h, axis=-1, keepdims=True)
    centered = h - mean
    var = jnp.mean(centered * centered, axis=-1, keepdims=True)
    out = centered * lax.rsqrt(var + eps) * gamma + beta

    o_ref[...] = out.astype(o_ref.dtype)


def _default_block_rows(rows, dtype):
    """Dtype-aware row tile: MXU/sublane aligned, sized for VMEM pipelining."""
    itemsize = jnp.dtype(dtype).itemsize
    target = 1024 if itemsize <= 2 else 512  # bf16/fp8 vs f32
    if rows <= target:
        return rows  # small case: single tile covering the full (padded) array
    return target


def bert_prediction_head_transform(hidden_states, w_t, bias, gamma, beta,
                                   *, eps=1e-12, block_rows=None):
    """hidden_states: (B, S, H); w_t: (H, H) already transposed (in, out);
    bias/gamma/beta: (H,)."""
    B, S, H = hidden_states.shape
    rows = B * S
    x2d = hidden_states.reshape(rows, H)

    if block_rows is None:
        block_rows = _default_block_rows(rows, hidden_states.dtype)
    if block_rows >= rows:
        block_rows = rows            # single tile == full array dims (always legal)
    else:
        block_rows = max(8, (block_rows // 8) * 8)  # sublane-aligned multi-tile

    # Pad rows up to a multiple of the tile (handles arbitrary B*S).
    num_tiles = pl.cdiv(rows, block_rows)
    padded_rows = num_tiles * block_rows
    if padded_rows != rows:
        x2d = jnp.pad(x2d, ((0, padded_rows - rows), (0, 0)))

    bias2 = bias.reshape(1, H)
    gamma2 = gamma.reshape(1, H)
    beta2 = beta.reshape(1, H)

    # VMEM budget: double-buffered x/out tiles + single-buffered weight &
    # per-feature vectors + headroom for the f32 epilogue temporaries.
    x_item = jnp.dtype(hidden_states.dtype).itemsize
    w_item = jnp.dtype(w_t.dtype).itemsize
    est = (2 * block_rows * H * x_item        # x, double buffered
           + 2 * block_rows * H * x_item      # out, double buffered
           + H * H * w_item                   # weight, single buffered (resident)
           + 3 * H * 4                        # bias/gamma/beta
           + 4 * block_rows * H * 4)          # f32 intermediates headroom
    vmem_limit = int(min(max(est, 32 << 20), 64 << 20))

    kernel = functools.partial(_transform_kernel, eps=float(eps))

    resident = functools.partial(pl.BlockSpec, pipeline_mode=pl.Buffered(1))

    out2d = pl.pallas_call(
        kernel,
        out_shape=jax.ShapeDtypeStruct((padded_rows, H), hidden_states.dtype),
        grid_spec=pltpu.PrefetchScalarGridSpec(
            num_scalar_prefetch=0,
            grid=(num_tiles,),
            in_specs=[
                pl.BlockSpec((block_rows, H), lambda i: (i, 0)),   # x tile
                resident((H, H), lambda i: (0, 0)),                # weight (resident)
                resident((1, H), lambda i: (0, 0)),                # bias
                resident((1, H), lambda i: (0, 0)),                # gamma
                resident((1, H), lambda i: (0, 0)),                # beta
            ],
            out_specs=pl.BlockSpec((block_rows, H), lambda i: (i, 0)),
        ),
        compiler_params=pltpu.CompilerParams(
            dimension_semantics=("parallel",),
            vmem_limit_bytes=vmem_limit,
        ),
    )(x2d, w_t, bias2, gamma2, beta2)

    if padded_rows != rows:
        out2d = out2d[:rows]
    return out2d.reshape(B, S, H)


def _reference(hidden_states, w_t, bias, gamma, beta, eps=1e-12):
    h = jnp.einsum("bsh,hk->bsk", hidden_states.astype(jnp.float32),
                   w_t.astype(jnp.float32)) + bias.astype(jnp.float32)
    h = 0.5 * h * (1.0 + lax.erf(h / jnp.sqrt(2.0)))
    mean = jnp.mean(h, axis=-1, keepdims=True)
    var = jnp.mean((h - mean) ** 2, axis=-1, keepdims=True)
    out = ((h - mean) * lax.rsqrt(var + eps)) * gamma + beta
    return out.astype(hidden_states.dtype)


if __name__ == "__main__":
    eps = 1e-12
    key = jax.random.PRNGKey(0)
    kx, kw, kb, kg, kbeta, kx2 = jax.random.split(key, 6)

    hidden = 32
    # nn.Linear(hidden, hidden): weight (out, in); pass transposed (in, out).
    w = jax.random.normal(kw, (hidden, hidden), dtype=jnp.float32) / math.sqrt(hidden)
    w_t = w.T
    b = jax.random.normal(kb, (hidden,), dtype=jnp.float32) * 0.02
    gamma = 1.0 + 0.1 * jax.random.normal(kg, (hidden,), dtype=jnp.float32)
    beta = 0.1 * jax.random.normal(kbeta, (hidden,), dtype=jnp.float32)

    # Case 1: canonical small shape, single row tile.
    batch, seq = 2, 8
    x = jax.random.normal(kx, (batch, seq, hidden), dtype=jnp.float32)
    out = bert_prediction_head_transform(x, w_t, b, gamma, beta, eps=eps)
    out = jax.block_until_ready(out)
    ref = _reference(x, w_t, b, gamma, beta, eps=eps)
    assert out.shape == (batch, seq, hidden)
    assert jnp.allclose(out, ref, atol=1e-5, rtol=1e-5), "case 1 mismatch vs reference"

    # Case 2: rows (3*5=15) not divisible by the tile -> exercises padding +
    # a multi-step pipelined grid.
    x2 = jax.random.normal(kx2, (3, 5, hidden), dtype=jnp.float32)
    out2 = bert_prediction_head_transform(x2, w_t, b, gamma, beta, eps=eps, block_rows=8)
    out2 = jax.block_until_ready(out2)
    ref2 = _reference(x2, w_t, b, gamma, beta, eps=eps)
    assert out2.shape == (3, 5, hidden)
    assert jnp.allclose(out2, ref2, atol=1e-5, rtol=1e-5), "case 2 mismatch vs reference"

    # Case 3: bf16 inputs exercise the native-dtype MXU path + f32 epilogue.
    xb = x.astype(jnp.bfloat16)
    wb = w_t.astype(jnp.bfloat16)
    out3 = bert_prediction_head_transform(xb, wb, b, gamma, beta, eps=eps)
    out3 = jax.block_until_ready(out3)
    ref3 = _reference(xb, wb, b, gamma, beta, eps=eps)
    assert out3.shape == (batch, seq, hidden)
    assert jnp.allclose(out3.astype(jnp.float32), ref3.astype(jnp.float32),
                        atol=3e-2, rtol=3e-2), "case 3 mismatch vs reference"

    print("KERNEL_OK")
</pallas_src>

<mosaic_0001>
module attributes {stable_mosaic.version = 11 : i64} {
  func.func @_transform_kernel(%arg0: i32, %arg1: memref<16x32xf32, #tpu.memory_space<vmem>>, %arg2: memref<32x32xf32, #tpu.memory_space<vmem>>, %arg3: memref<1x32xf32, #tpu.memory_space<vmem>>, %arg4: memref<1x32xf32, #tpu.memory_space<vmem>>, %arg5: memref<1x32xf32, #tpu.memory_space<vmem>>, %arg6: memref<16x32xf32, #tpu.memory_space<vmem>>) attributes {dimension_semantics = [#tpu.dimension_semantics<parallel>], iteration_bounds = array<i64: 1>, scalar_prefetch = 0 : i64, scratch_operands = 0 : i64, tpu.core_type = #tpu.core_type<tc>, window_params = [{transform_indices = @transform_0, window_bounds = array<i64: 16, 32>}, {pipeline_mode = #tpu.pipeline_mode<synchronous>, transform_indices = @transform_1, window_bounds = array<i64: 32, 32>}, {pipeline_mode = #tpu.pipeline_mode<synchronous>, transform_indices = @transform_2, window_bounds = array<i64: 1, 32>}, {pipeline_mode = #tpu.pipeline_mode<synchronous>, transform_indices = @transform_3, window_bounds = array<i64: 1, 32>}, {pipeline_mode = #tpu.pipeline_mode<synchronous>, transform_indices = @transform_4, window_bounds = array<i64: 1, 32>}, {transform_indices = @transform_5, window_bounds = array<i64: 16, 32>}]} {
    %c0 = arith.constant 0 : index
    %c0_0 = arith.constant 0 : index
    %0 = vector.load %arg1[%c0, %c0_0] : memref<16x32xf32, #tpu.memory_space<vmem>>, vector<16x32xf32>
    %c0_1 = arith.constant 0 : index
    %c0_2 = arith.constant 0 : index
    %1 = vector.load %arg2[%c0_1, %c0_2] : memref<32x32xf32, #tpu.memory_space<vmem>>, vector<32x32xf32>
    %cst = arith.constant dense<0.000000e+00> : vector<16x32xf32>
    %2 = tpu.matmul %0, %1, %cst {dimension_numbers = #tpu.dot_dimension_numbers<[1], [0], [0], [1], [0, 0, 1, 1], [], []>} : vector<16x32xf32>, vector<32x32xf32>, vector<16x32xf32> -> vector<16x32xf32>
    %c0_3 = arith.constant 0 : index
    %c0_4 = arith.constant 0 : index
    %3 = vector.load %arg3[%c0_3, %c0_4] : memref<1x32xf32, #tpu.memory_space<vmem>>, vector<1x32xf32>
    %c0_5 = arith.constant 0 : index
    %c0_6 = arith.constant 0 : index
    %4 = vector.load %arg4[%c0_5, %c0_6] : memref<1x32xf32, #tpu.memory_space<vmem>>, vector<1x32xf32>
    %c0_7 = arith.constant 0 : index
    %c0_8 = arith.constant 0 : index
    %5 = vector.load %arg5[%c0_7, %c0_8] : memref<1x32xf32, #tpu.memory_space<vmem>>, vector<1x32xf32>
    %6 = vector.broadcast %3 : vector<1x32xf32> to vector<16x32xf32>
    %7 = arith.addf %2, %6 : vector<16x32xf32>
    %cst_9 = arith.constant 5.000000e-01 : f32
    %8 = vector.broadcast %cst_9 : f32 to vector<16x32xf32>
    %9 = arith.mulf %8, %7 : vector<16x32xf32>
    %cst_10 = arith.constant 0.707106769 : f32
    %10 = vector.broadcast %cst_10 : f32 to vector<16x32xf32>
    %11 = arith.mulf %7, %10 : vector<16x32xf32>
    %12 = math.erf %11 : vector<16x32xf32>
    %cst_11 = arith.constant 1.000000e+00 : f32
    %13 = vector.broadcast %cst_11 : f32 to vector<16x32xf32>
    %14 = arith.addf %13, %12 : vector<16x32xf32>
    %15 = arith.mulf %9, %14 : vector<16x32xf32>
    %cst_12 = arith.constant dense<0.000000e+00> : vector<16xf32>
    %16 = vector.multi_reduction <add>, %15, %cst_12 [1] : vector<16x32xf32> to vector<16xf32>
    %17 = vector.shape_cast %16 : vector<16xf32> to vector<16x1xf32>
    %cst_13 = arith.constant 3.200000e+01 : f32
    %18 = vector.broadcast %cst_13 : f32 to vector<16x1xf32>
    %19 = arith.divf %17, %18 : vector<16x1xf32>
    %20 = vector.broadcast %19 : vector<16x1xf32> to vector<16x32xf32>
    %21 = arith.subf %15, %20 : vector<16x32xf32>
    %22 = arith.mulf %21, %21 : vector<16x32xf32>
    %cst_14 = arith.constant dense<0.000000e+00> : vector<16xf32>
    %23 = vector.multi_reduction <add>, %22, %cst_14 [1] : vector<16x32xf32> to vector<16xf32>
    %24 = vector.shape_cast %23 : vector<16xf32> to vector<16x1xf32>
    %cst_15 = arith.constant 3.200000e+01 : f32
    %25 = vector.broadcast %cst_15 : f32 to vector<16x1xf32>
    %26 = arith.divf %24, %25 : vector<16x1xf32>
    %cst_16 = arith.constant 9.99999996E-13 : f32
    %27 = vector.broadcast %cst_16 : f32 to vector<16x1xf32>
    %28 = arith.addf %26, %27 : vector<16x1xf32>
    %29 = math.rsqrt %28 : vector<16x1xf32>
    %30 = vector.broadcast %29 : vector<16x1xf32> to vector<16x32xf32>
    %31 = arith.mulf %21, %30 : vector<16x32xf32>
    %32 = vector.broadcast %4 : vector<1x32xf32> to vector<16x32xf32>
    %33 = arith.mulf %31, %32 : vector<16x32xf32>
    %34 = vector.broadcast %5 : vector<1x32xf32> to vector<16x32xf32>
    %35 = arith.addf %33, %34 : vector<16x32xf32>
    %c0_17 = arith.constant 0 : index
    %c0_18 = arith.constant 0 : index
    %36 = vector.load %arg6[%c0_17, %c0_18] : memref<16x32xf32, #tpu.memory_space<vmem>>, vector<16x32xf32>
    tpu.vector_store %arg6[%c0_17, %c0_18], %35 {strides = array<i32>} : memref<16x32xf32, #tpu.memory_space<vmem>>, vector<16x32xf32>,
    return
  }
  func.func @transform_0(%arg0: i32) -> (i32, i32) {
    %c0_i32 = arith.constant 0 : i32
    %c0_i32_0 = arith.constant 0 : i32
    return %arg0, %c0_i32 : i32, i32
  }
  func.func @transform_1(%arg0: i32) -> (i32, i32) {
    %c0_i32 = arith.constant 0 : i32
    %c0_i32_0 = arith.constant 0 : i32
    %c0_i32_1 = arith.constant 0 : i32
    return %c0_i32, %c0_i32_0 : i32, i32
  }
  func.func @transform_2(%arg0: i32) -> (i32, i32) {
    %c0_i32 = arith.constant 0 : i32
    %c0_i32_0 = arith.constant 0 : i32
    %c0_i32_1 = arith.constant 0 : i32
    return %c0_i32, %c0_i32_0 : i32, i32
  }
  func.func @transform_3(%arg0: i32) -> (i32, i32) {
    %c0_i32 = arith.constant 0 : i32
    %c0_i32_0 = arith.constant 0 : i32
    %c0_i32_1 = arith.constant 0 : i32
    return %c0_i32, %c0_i32_0 : i32, i32
  }
  func.func @transform_4(%arg0: i32) -> (i32, i32) {
    %c0_i32 = arith.constant 0 : i32
    %c0_i32_0 = arith.constant 0 : i32
    %c0_i32_1 = arith.constant 0 : i32
    return %c0_i32, %c0_i32_0 : i32, i32
  }
  func.func @transform_5(%arg0: i32) -> (i32, i32) {
    %c0_i32 = arith.constant 0 : i32
    %c0_i32_0 = arith.constant 0 : i32
    return %arg0, %c0_i32 : i32, i32
  }
}

</mosaic_0001>

<llo_original>
// kernel: tpu_custom_call.1
$region0: #{tpu_custom_call.1}
  #allocation0 [shape = 'u32[]', space=smem, size = 0x4, offset = 0x4, fixed_abs, tag = 'smem constant byte address 0x4 - core index']
  #allocation1 [shape = 'u32[144,128]{1,0:T(1,128)}', space=vmem, size = 0x12000, scoped, tag = 'internal scratch']
  %s0 = inlined_call_operand.hbm [shape: f32[16,32], index: 0, kind: input, shape index: {}]
  %s1 = inlined_call_operand.hbm [shape: f32[32,32], index: 1, kind: input, shape index: {}]
  %s2 = inlined_call_operand.vmem [shape: f32[1,32], index: 2, kind: input, shape index: {}]
  %s3 = inlined_call_operand.vmem [shape: f32[1,32], index: 3, kind: input, shape index: {}]
  %s4 = inlined_call_operand.vmem [shape: f32[1,32], index: 4, kind: input, shape index: {}]
  %s5 = inlined_call_operand.hbm [shape: f32[16,32], index: 5, kind: output, shape index: {}]
  %s6 = sld [smem:[#allocation0]]
  $region38: #{tpu_custom_call.1} parent=0
    _
  %s8 = ssub.s32 1, %s6
  %s9 = scalar_select 0, %s8, %s6
  $region1: #{tpu_custom_call.1} parent=0
    #allocation2 [shape = 'u8[8192]{0}', space=vmem, size = 0x2000, scoped, tag = 'input window, operand 0, single buffered']
    #allocation3 [shape = 's32[1]{0}', space=sflag, size = 0x4, scoped, tag = 'scoped memory for tpu_custom_call.1']
    #allocation4 [shape = 's32[1]{0}', space=sflag, size = 0x4, scoped, tag = 'scoped memory for tpu_custom_call.1']
    #allocation5 [shape = 'u8[16384]{0}', space=vmem, size = 0x4000, scoped, tag = 'input window, operand 1, single buffered']
    #allocation6 [shape = 's32[1]{0}', space=sflag, size = 0x4, scoped, tag = 'scoped memory for tpu_custom_call.1']
    #allocation7 [shape = 'u8[8192]{0}', space=vmem, size = 0x2000, scoped, tag = 'output window, operand 0, single buffered']
    %10 = vsyncpa [#allocation3], 0
    %11 = vsyncpa [#allocation6], 0
    %12 = vsyncpa [#allocation4], 0
    // Predicated region
    $region2: #{tpu_custom_call.1} parent=1 // pred_check
      _
    $region3: #{tpu_custom_call.1} parent=1 // pred_check_branch
      %14 = sbr.rel (0) target = $region5
    $region4: #{tpu_custom_call.1} parent=1 // pred_region
      %s16 = ssub.s32 256, 256
      %17 = vsyncadd [#allocation3], %s16
      %s18 = sshll.u32 [#allocation2], 4
      %s19 = int_to_ptr.vmem [resolvable:$true] %s18
      %24 = dma.hbm_to_vmem [thread:$0]  %s0, 256, %s19, [#allocation3], 128, 128, 8
    $region5: #{tpu_custom_call.1} parent=1 // pred_fallthru
      _
    // Predicated region
    $region6: #{tpu_custom_call.1} parent=1 // pred_check
      _
    $region7: #{tpu_custom_call.1} parent=1 // pred_check_branch
      %26 = sbr.rel (0) target = $region9
    $region8: #{tpu_custom_call.1} parent=1 // pred_region
      %s28 = ssub.s32 512, 512
      %29 = vsyncadd [#allocation6], %s28
      %s30 = sshll.u32 [#allocation5], 4
      %s31 = int_to_ptr.vmem [resolvable:$true] %s30
      %36 = dma.hbm_to_vmem [thread:$0]  %s1, 512, %s31, [#allocation6], 128, 128, 8
    $region9: #{tpu_custom_call.1} parent=1 // pred_fallthru
      _
    // Predicated region
    $region10: #{tpu_custom_call.1} parent=1 // pred_check
      _
    $region11: #{tpu_custom_call.1} parent=1 // pred_check_branch
      %38 = sbr.rel (0) target = $region13
    $region12: #{tpu_custom_call.1} parent=1 // pred_region
      _
    $region13: #{tpu_custom_call.1} parent=1 // pred_fallthru
      _
    // Predicated region
    $region14: #{tpu_custom_call.1} parent=1 // pred_check
      _
    $region15: #{tpu_custom_call.1} parent=1 // pred_check_branch
      %40 = sbr.rel (0) target = $region17
    $region16: #{tpu_custom_call.1} parent=1 // pred_region
      _
    $region17: #{tpu_custom_call.1} parent=1 // pred_fallthru
      _
    // Predicated region
    $region18: #{tpu_custom_call.1} parent=1 // pred_check
      _
    $region19: #{tpu_custom_call.1} parent=1 // pred_check_branch
      %42 = sbr.rel (0) target = $region21
    $region20: #{tpu_custom_call.1} parent=1 // pred_region
      _
    $region21: #{tpu_custom_call.1} parent=1 // pred_fallthru
      _
    // Predicated region
    $region22: #{tpu_custom_call.1} parent=1 // pred_check
      _
    $region23: #{tpu_custom_call.1} parent=1 // pred_check_branch
      %44 = sbr.rel (0) target = $region25
    $region24: #{tpu_custom_call.1} parent=1 // pred_region
      %45 = dma.done [#allocation3], 256
    $region25: #{tpu_custom_call.1} parent=1 // pred_fallthru
      _
    // Predicated region
    $region26: #{tpu_custom_call.1} parent=1 // pred_check
      _
    $region27: #{tpu_custom_call.1} parent=1 // pred_check_branch
      %47 = sbr.rel (0) target = $region29
    $region28: #{tpu_custom_call.1} parent=1 // pred_region
      %48 = dma.done [#allocation6], 512
    $region29: #{tpu_custom_call.1} parent=1 // pred_fallthru
      _
    %v49 = vld [vmem:[#allocation2] sm:$0xff]
    %v50 = vld [vmem:[#allocation2 + $0x8] sm:$0xff]
    %v51 = vld [vmem:[#allocation5] sm:$0xff]
    %v52 = vld [vmem:[#allocation5 + $0x8] sm:$0xff]
    %v53 = vld [vmem:[#allocation5 + $0x10] sm:$0xff]
    %v54 = vld [vmem:[#allocation5 + $0x18] sm:$0xff]
    %v55 = vld [vmem:[%s2] sm:$0x1]
    %v56 = vld [vmem:[%s3] sm:$0x1]
    %v57 = vld [vmem:[%s4] sm:$0x1]
    %v59 = vlaneseq
    %v60 = vshrl.u32 %v59, 7
    %v61 = vsub.s32 0, %v60
    %v62 = vrot.slane %v55, %v61
    %vm64 = vcmask 261120
    %v66 = vsel %vm64, %v49, 0
    %v69 = vsel %vm64, %v50, 0
    %71 = vmatprep.subr.mxu0 0.0
    %72 = vmatpush1.msra.mxu0 %v51
    %73 = vmatprep.subr.mxu0 0.0
    %74 = vmatpush1.msra.mxu0 %v52
    %75 = vmatprep.subr.mxu0 0.0
    %76 = vmatpush1.msra.mxu0 %v53
    %77 = vmatprep.subr.mxu0 0.0
    %78 = vmatpush1.msra.mxu0 %v54
    %79 = vmatprep.subr.mxu0 0.0
    %80 = vmatpush1.msra.mxu0 0.0
    %81 = vmatprep.subr.mxu0 0.0
    %82 = vmatpush1.msra.mxu0 0.0
    %83 = vmatprep.subr.mxu0 0.0
    %84 = vmatpush1.msra.mxu0 0.0
    %85 = vmatprep.subr.mxu0 0.0
    %86 = vmatpush1.msra.mxu0 0.0
    %87 = vmatprep.subr.mxu0 0.0
    %88 = vmatpush1.msra.mxu0 0.0
    %89 = vmatprep.subr.mxu0 0.0
    %90 = vmatpush1.msra.mxu0 0.0
    %91 = vmatprep.subr.mxu0 0.0
    %92 = vmatpush1.msra.mxu0 0.0
    %93 = vmatprep.subr.mxu0 0.0
    %94 = vmatpush1.msra.mxu0 0.0
    %95 = vmatprep.subr.mxu0 0.0
    %96 = vmatpush1.msra.mxu0 0.0
    %97 = vmatprep.subr.mxu0 0.0
    %98 = vmatpush1.msra.mxu0 0.0
    %99 = vmatprep.subr.mxu0 0.0
    %100 = vmatpush1.msra.mxu0 0.0
    %101 = vmatprep.subr.mxu0 0.0
    %102 = vmatpush1.msra.mxu0 0.0
    %103 = vmatprep.subr.mxu0 0.0
    %104 = vmatpush1.msra.mxu0 0.0
    %105 = vmatprep.subr.mxu0 0.0
    %106 = vmatpush1.msra.mxu0 0.0
    %107 = vmatprep.subr.mxu0 0.0
    %108 = vmatpush1.msra.mxu0 0.0
    %109 = vmatprep.subr.mxu0 0.0
    %110 = vmatpush1.msra.mxu0 0.0
    %111 = vmatprep.subr.mxu0 0.0
    %112 = vmatpush1.msra.mxu0 0.0
    %113 = vmatprep.subr.mxu0 0.0
    %114 = vmatpush1.msra.mxu0 0.0
    %115 = vmatprep.subr.mxu0 0.0
    %116 = vmatpush1.msra.mxu0 0.0
    %117 = vmatprep.subr.mxu0 0.0
    %118 = vmatpush1.msra.mxu0 0.0
    %119 = vmatprep.subr.mxu0 0.0
    %120 = vmatpush1.msra.mxu0 0.0
    %121 = vmatprep.subr.mxu0 0.0
    %122 = vmatpush1.msra.mxu0 0.0
    %123 = vmatprep.subr.mxu0 0.0
    %124 = vmatpush1.msra.mxu0 0.0
    %125 = vmatprep.subr.mxu0 0.0
    %126 = vmatpush1.msra.mxu0 0.0
    %127 = vmatprep.subr.mxu0 0.0
    %128 = vmatpush1.msra.mxu0 0.0
    %129 = vmatprep.subr.mxu0 0.0
    %130 = vmatpush1.msra.mxu0 0.0
    %131 = vmatprep.subr.mxu0 0.0
    %132 = vmatpush1.msra.mxu0 0.0
    %133 = vmatprep.subr.mxu0 0.0
    %134 = vmatpush1.msra.mxu0 0.0
    %135 = vmatprep.mubr.f32.mxu0 0.0
    %136 = vmatmul.mubr.f32.gmra.mrb[0].mxu0 %v66
    %v137 = vpop.f32.mrb[0].mxu0
    %v138 = vadd.f32 %v62, %v137
    %v139 = vpop.f32.mrb[0].mxu0
    %140 = vmatprep.mubr.f32.mxu0 0.0
    %141 = vmatmul.mubr.f32.gmra.mrb[0].mxu0 %v69
    %v142 = vpop.f32.mrb[0].mxu0
    %v143 = vadd.f32 %v62, %v142
    %v144 = vpop.f32.mrb[0].mxu0
    %145 = vdwg.mxu0
    %v146 = vmul.f32 %v138, 0.5
    %v147 = vmul.f32 %v143, 0.5
    %v148 = vmul.f32 %v138, 0.70710677
    %v149 = vmul.f32 %v143, 0.70710677
    %v150 = verf.f32.pop %v148
    %v151 = verf.f32.pop %v149
    %v152 = vadd.f32 %v150, 1.0
    %v153 = vadd.f32 %v151, 1.0
    %v154 = vmul.f32 %v146, %v152
    %v155 = vmul.f32 %v147, %v153
    %v156 = vsel %vm64, %v154, 0.0
    %157 = vadd.xlane.f32.xlu0 %v156
    %v158 = vpop.xlane.xlu0 %157
    %v159 = vsel %vm64, %v155, 0.0
    %160 = vadd.xlane.f32.xlu0 %v159
    %v161 = vpop.xlane.xlu0 %160
    %v162 = vrcp.pop 32.0
    %v163 = vmul.f32 %v158, %v162
    %v164 = vmul.f32 %v161, %v162
    %v165 = vsub.f32 %v154, %v163
    %v166 = vsub.f32 %v155, %v164
    %v167 = vmul.f32 %v165, %v165
    %v168 = vmul.f32 %v166, %v166
    %v169 = vsel %vm64, %v167, 0.0
    %170 = vadd.xlane.f32.xlu0 %v169
    %v171 = vpop.xlane.xlu0 %170
    %v172 = vsel %vm64, %v168, 0.0
    %173 = vadd.xlane.f32.xlu0 %v172
    %v174 = vpop.xlane.xlu0 %173
    %v175 = vmul.f32 %v171, %v162
    %v176 = vmul.f32 %v174, %v162
    %v177 = vadd.f32 %v175, 1e-12
    %v178 = vadd.f32 %v176, 1e-12
    %v179 = vrsqrt.pop %v177
    %v180 = vrsqrt.pop %v178
    %v181 = vmul.f32 %v165, %v179
    %v182 = vmul.f32 %v166, %v180
    %v184 = vlaneseq
    %v185 = vshrl.u32 %v184, 7
    %v186 = vsub.s32 0, %v185
    %v187 = vrot.slane %v56, %v186
    %v189 = vmul.f32 %v181, %v187
    %v190 = vmul.f32 %v182, %v187
    %v192 = vlaneseq
    %v193 = vshrl.u32 %v192, 7
    %v194 = vsub.s32 0, %v193
    %v195 = vrot.slane %v57, %v194
    %v197 = vadd.f32 %v189, %v195
    %v198 = vadd.f32 %v190, %v195
    %199 = vst.msk [vmem:[#allocation7] sm:$0xff] %vm64, %v197
    %200 = vst.msk [vmem:[#allocation7 + $0x8] sm:$0xff] %vm64, %v198
    // Predicated region
    $region30: #{tpu_custom_call.1} parent=1 // pred_check
      _
    $region31: #{tpu_custom_call.1} parent=1 // pred_check_branch
      %202 = sbr.rel (0) target = $region33
    $region32: #{tpu_custom_call.1} parent=1 // pred_region
      %s204 = ssub.s32 256, 256
      %205 = vsyncadd [#allocation4], %s204
      %s206 = sshll.u32 [#allocation7], 4
      %s207 = int_to_ptr.vmem [resolvable:$true] %s206
      %212 = dma.vmem_to_hbm [thread:$0]  %s207, 256, %s5, [#allocation4], 128, 128, 8
    $region33: #{tpu_custom_call.1} parent=1 // pred_fallthru
      _
    // Predicated region
    $region34: #{tpu_custom_call.1} parent=1 // pred_check
      _
    $region35: #{tpu_custom_call.1} parent=1 // pred_check_branch
      %214 = sbr.rel (0) target = $region37
    $region36: #{tpu_custom_call.1} parent=1 // pred_region
      %215 = dma.done [#allocation4], 256
    $region37: #{tpu_custom_call.1} parent=1 // pred_fallthru
      _
    %216 = vsyncpa [#allocation3], 1
    %217 = vsyncpa [#allocation6], 1
    %218 = vsyncpa [#allocation4], 1

</llo_original>
